<compile_context>
chip_gen: v7x
topology: tpu7x:2x2x1
jax: 0.10.0
libtpu: 0.0.40
codegen_flags: <defaults>
</compile_context>

<pallas_src>
import jax
import jax.numpy as jnp
from jax.experimental import pallas as pl
from jax.experimental.pallas import tpu as pltpu


def _rmsnorm_kernel(eps, inv_hidden):
    def kernel(x_ref, w_ref, o_ref):
        # Compute in float32 (matches RMSNorm's .to(torch.float32) upcast).
        x = x_ref[...].astype(jnp.float32)
        # sum * (1/hidden) with a compile-time constant reciprocal; rsqrt on EUP.
        var = jnp.sum(x * x, axis=-1, keepdims=True) * inv_hidden
        inv = jax.lax.rsqrt(var + eps)
        w = w_ref[...].astype(jnp.float32)  # (1, hidden), resident in VMEM
        o_ref[...] = (x * inv * w).astype(o_ref.dtype)

    return kernel


def _choose_row_tile(rows, hidden, itemsize, vmem_tile_budget_bytes):
    """Pick the largest row tile that fits the VMEM pipeline budget."""
    # Sublane packing of the I/O dtype: 4B -> 8 rows/vreg, 2B -> 16, 1B -> 32.
    packing = max(8, 32 // max(itemsize, 1))
    # Per-row bytes live in the pipeline:
    #   2x double-buffered input block + 2x double-buffered output block
    #   + ~2 f32 working copies inside the body.
    bytes_per_row = 4 * hidden * itemsize + 2 * hidden * 4
    tile = vmem_tile_budget_bytes // bytes_per_row
    tile = max(packing, (tile // packing) * packing)
    # No point exceeding the (packing-rounded) row count.
    rows_padded = -(-rows // packing) * packing
    tile = min(tile, rows_padded)
    # Keep per-step block sizes sane for small hidden dims.
    cap = 1024 if itemsize >= 4 else 2048
    tile = min(tile, cap)
    return tile


def rmsnorm_pallas(x, weight, eps, *, row_tile=None,
                   vmem_tile_budget_bytes=32 << 20):
    """x: [..., hidden], weight: [hidden]. Returns RMSNorm(x) in x.dtype."""
    orig_shape = x.shape
    hidden = orig_shape[-1]
    x2d = x.reshape(-1, hidden)
    rows = x2d.shape[0]
    itemsize = jnp.dtype(x.dtype).itemsize

    if row_tile is None:
        row_tile = _choose_row_tile(rows, hidden, itemsize,
                                    vmem_tile_budget_bytes)

    # Tail handling: pad rows to a tile multiple (zero rows -> zero output).
    num_tiles = -(-rows // row_tile)
    padded_rows = num_tiles * row_tile
    if padded_rows != rows:
        x2d = jnp.pad(x2d, ((0, padded_rows - rows), (0, 0)))

    w2d = weight.reshape(1, hidden)

    # NOTE: for production models hidden is a multiple of 128 (lane-dense
    # stores); tiny hidden (as in the __main__ smoke test) is correct but
    # lane-sparse.
    out = pl.pallas_call(
        _rmsnorm_kernel(float(eps), 1.0 / hidden),
        out_shape=jax.ShapeDtypeStruct((padded_rows, hidden), x.dtype),
        grid_spec=pltpu.PrefetchScalarGridSpec(
            num_scalar_prefetch=0,
            grid=(num_tiles,),
            in_specs=[
                pl.BlockSpec((row_tile, hidden), lambda i: (i, 0)),
                # Weight: untiled, resident in VMEM (no per-step re-DMA).
                pl.BlockSpec(memory_space=pltpu.MemorySpace.VMEM),
            ],
            out_specs=pl.BlockSpec((row_tile, hidden), lambda i: (i, 0)),
        ),
        compiler_params=pltpu.CompilerParams(
            dimension_semantics=("parallel",),   # shards across v7x's 2 TCs
            vmem_limit_bytes=48 << 20,           # headroom-safe on v5e/v6e/v7x
        ),
    )(x2d, w2d)

    if padded_rows != rows:
        out = out[:rows]
    return out.reshape(orig_shape)


def moe_norm_pp_forward(hidden_states, position_ids, lb_loss, weight, eps):
    """Mirrors MoeNormPP.forward: (RMSNorm(hidden_states), lb_loss)."""
    del position_ids  # unused, exactly as in the PyTorch module
    return rmsnorm_pallas(hidden_states, weight, eps), lb_loss


def _reference_rmsnorm(x, weight, eps):
    x32 = x.astype(jnp.float32)
    var = jnp.mean(x32 * x32, axis=-1, keepdims=True)
    return (weight.astype(jnp.float32) * (x32 * jax.lax.rsqrt(var + eps))).astype(x.dtype)


if __name__ == "__main__":
    # Small config: batch=2, seq=8, hidden=32, rms_norm_eps=1e-6
    batch, seq, hidden = 2, 8, 32
    eps = 1e-6

    key = jax.random.PRNGKey(0)
    k_x, k_w, k_x2, k_w2 = jax.random.split(key, 4)
    hidden_states = jax.random.normal(k_x, (batch, seq, hidden), dtype=jnp.float32)
    position_ids = jnp.broadcast_to(jnp.arange(seq, dtype=jnp.int32), (batch, seq))
    lb_loss = jnp.asarray(0.1234, dtype=jnp.float32)

    # Deterministic parameter init: RMSNorm weight = ones (PyTorch default),
    # perturbed so the weight multiply is exercised.
    weight = jnp.ones((hidden,), jnp.float32) + 0.01 * jax.random.normal(
        k_w, (hidden,), dtype=jnp.float32
    )
    # TODO(synk): self.dummy (nn.Linear(1,1)) is never used in forward; omitted.

    out, lb_out = moe_norm_pp_forward(hidden_states, position_ids, lb_loss, weight, eps)
    out = jax.block_until_ready(out)
    lb_out = jax.block_until_ready(lb_out)

    ref = _reference_rmsnorm(hidden_states, weight, eps)
    assert jnp.allclose(out, ref, atol=1e-5, rtol=1e-5), "mismatch vs reference (f32)"
    assert jnp.allclose(lb_out, lb_loss), "lb_loss must pass through unchanged"

    # Second check: bf16 input with a token count that is NOT a tile multiple,
    # exercising the padding / tail path and packed-sublane tiling.
    b2, s2, h2 = 2, 13, 128
    x_bf16 = jax.random.normal(k_x2, (b2, s2, h2), dtype=jnp.float32).astype(jnp.bfloat16)
    w2 = jnp.ones((h2,), jnp.float32) + 0.01 * jax.random.normal(k_w2, (h2,), jnp.float32)
    out2 = jax.block_until_ready(rmsnorm_pallas(x_bf16, w2, eps))
    ref2 = _reference_rmsnorm(x_bf16, w2, eps)
    assert out2.shape == x_bf16.shape
    assert jnp.allclose(out2.astype(jnp.float32), ref2.astype(jnp.float32),
                        atol=2e-2, rtol=2e-2), "mismatch vs reference (bf16 tail case)"

    print("KERNEL_OK")
</pallas_src>

<mosaic_0001>
module attributes {stable_mosaic.version = 11 : i64} {
  func.func @kernel(%arg0: i32, %arg1: memref<16x32xf32, #tpu.memory_space<vmem>>, %arg2: memref<1x32xf32, #tpu.memory_space<vmem>>, %arg3: memref<16x32xf32, #tpu.memory_space<vmem>>) attributes {dimension_semantics = [#tpu.dimension_semantics<parallel>], iteration_bounds = array<i64: 1>, scalar_prefetch = 0 : i64, scratch_operands = 0 : i64, tpu.core_type = #tpu.core_type<tc>, window_params = [{transform_indices = @transform_0, window_bounds = array<i64: 16, 32>}, {pipeline_mode = #tpu.pipeline_mode<synchronous>, transform_indices = @transform_1, window_bounds = array<i64: 1, 32>}, {transform_indices = @transform_2, window_bounds = array<i64: 16, 32>}]} {
    %c0 = arith.constant 0 : index
    %c0_0 = arith.constant 0 : index
    %0 = vector.load %arg1[%c0, %c0_0] : memref<16x32xf32, #tpu.memory_space<vmem>>, vector<16x32xf32>
    %1 = arith.mulf %0, %0 : vector<16x32xf32>
    %cst = arith.constant dense<0.000000e+00> : vector<16xf32>
    %2 = vector.multi_reduction <add>, %1, %cst [1] : vector<16x32xf32> to vector<16xf32>
    %3 = vector.shape_cast %2 : vector<16xf32> to vector<16x1xf32>
    %cst_1 = arith.constant 3.125000e-02 : f32
    %4 = vector.broadcast %cst_1 : f32 to vector<16x1xf32>
    %5 = arith.mulf %3, %4 : vector<16x1xf32>
    %cst_2 = arith.constant 9.99999997E-7 : f32
    %6 = vector.broadcast %cst_2 : f32 to vector<16x1xf32>
    %7 = arith.addf %5, %6 : vector<16x1xf32>
    %8 = math.rsqrt %7 : vector<16x1xf32>
    %c0_3 = arith.constant 0 : index
    %c0_4 = arith.constant 0 : index
    %9 = vector.load %arg2[%c0_3, %c0_4] : memref<1x32xf32, #tpu.memory_space<vmem>>, vector<1x32xf32>
    %10 = vector.broadcast %8 : vector<16x1xf32> to vector<16x32xf32>
    %11 = arith.mulf %0, %10 : vector<16x32xf32>
    %12 = vector.broadcast %9 : vector<1x32xf32> to vector<16x32xf32>
    %13 = arith.mulf %11, %12 : vector<16x32xf32>
    %c0_5 = arith.constant 0 : index
    %c0_6 = arith.constant 0 : index
    %14 = vector.load %arg3[%c0_5, %c0_6] : memref<16x32xf32, #tpu.memory_space<vmem>>, vector<16x32xf32>
    tpu.vector_store %arg3[%c0_5, %c0_6], %13 {strides = array<i32>} : memref<16x32xf32, #tpu.memory_space<vmem>>, vector<16x32xf32>,
    return
  }
  func.func @transform_0(%arg0: i32) -> (i32, i32) {
    %c0_i32 = arith.constant 0 : i32
    %c0_i32_0 = arith.constant 0 : i32
    return %arg0, %c0_i32 : i32, i32
  }
  func.func @transform_1(%arg0: i32) -> (i32, i32) {
    %c0_i32 = arith.constant 0 : i32
    %c0_i32_0 = arith.constant 0 : i32
    %c0_i32_1 = arith.constant 0 : i32
    return %c0_i32, %c0_i32_0 : i32, i32
  }
  func.func @transform_2(%arg0: i32) -> (i32, i32) {
    %c0_i32 = arith.constant 0 : i32
    %c0_i32_0 = arith.constant 0 : i32
    return %arg0, %c0_i32 : i32, i32
  }
}

</mosaic_0001>

<llo_original>
// kernel: tpu_custom_call.1
$region0: #{tpu_custom_call.1}
  #allocation0 [shape = 'u32[]', space=smem, size = 0x4, offset = 0x4, fixed_abs, tag = 'smem constant byte address 0x4 - core index']
  #allocation1 [shape = 'u32[144,128]{1,0:T(1,128)}', space=vmem, size = 0x12000, scoped, tag = 'internal scratch']
  %s0 = inlined_call_operand.hbm [shape: f32[16,32], index: 0, kind: input, shape index: {}]
  %s1 = inlined_call_operand.vmem [shape: f32[1,32], index: 1, kind: input, shape index: {}]
  %s2 = inlined_call_operand.hbm [shape: f32[16,32], index: 2, kind: output, shape index: {}]
  %s3 = sld [smem:[#allocation0]]
  $region22: #{tpu_custom_call.1} parent=0
    _
  %s5 = ssub.s32 1, %s3
  %s6 = scalar_select 0, %s5, %s3
  $region1: #{tpu_custom_call.1} parent=0
    #allocation2 [shape = 'u8[8192]{0}', space=vmem, size = 0x2000, scoped, tag = 'input window, operand 0, single buffered']
    #allocation3 [shape = 's32[1]{0}', space=sflag, size = 0x4, scoped, tag = 'scoped memory for tpu_custom_call.1']
    #allocation4 [shape = 's32[1]{0}', space=sflag, size = 0x4, scoped, tag = 'scoped memory for tpu_custom_call.1']
    #allocation5 [shape = 'u8[8192]{0}', space=vmem, size = 0x2000, scoped, tag = 'output window, operand 0, single buffered']
    %7 = vsyncpa [#allocation3], 0
    %8 = vsyncpa [#allocation4], 0
    // Predicated region
    $region2: #{tpu_custom_call.1} parent=1 // pred_check
      _
    $region3: #{tpu_custom_call.1} parent=1 // pred_check_branch
      %10 = sbr.rel (0) target = $region5
    $region4: #{tpu_custom_call.1} parent=1 // pred_region
      %s12 = ssub.s32 256, 256
      %13 = vsyncadd [#allocation3], %s12
      %s14 = sshll.u32 [#allocation2], 4
      %s15 = int_to_ptr.vmem [resolvable:$true] %s14
      %20 = dma.hbm_to_vmem [thread:$0]  %s0, 256, %s15, [#allocation3], 128, 128, 8
    $region5: #{tpu_custom_call.1} parent=1 // pred_fallthru
      _
    // Predicated region
    $region6: #{tpu_custom_call.1} parent=1 // pred_check
      _
    $region7: #{tpu_custom_call.1} parent=1 // pred_check_branch
      %22 = sbr.rel (0) target = $region9
    $region8: #{tpu_custom_call.1} parent=1 // pred_region
      _
    $region9: #{tpu_custom_call.1} parent=1 // pred_fallthru
      _
    // Predicated region
    $region10: #{tpu_custom_call.1} parent=1 // pred_check
      _
    $region11: #{tpu_custom_call.1} parent=1 // pred_check_branch
      %24 = sbr.rel (0) target = $region13
    $region12: #{tpu_custom_call.1} parent=1 // pred_region
      %25 = dma.done [#allocation3], 256
    $region13: #{tpu_custom_call.1} parent=1 // pred_fallthru
      _
    %v26 = vld [vmem:[#allocation2] sm:$0xff]
    %v27 = vld [vmem:[#allocation2 + $0x8] sm:$0xff]
    %v28 = vmul.f32 %v26, %v26
    %v29 = vmul.f32 %v27, %v27
    %vm30 = vcmask 261120
    %v31 = vsel %vm30, %v28, 0.0
    %32 = vadd.xlane.f32.xlu0 %v31
    %v33 = vpop.xlane.xlu0 %32
    %v34 = vsel %vm30, %v29, 0.0
    %35 = vadd.xlane.f32.xlu0 %v34
    %v36 = vpop.xlane.xlu0 %35
    %v37 = vmul.f32 %v33, 0.03125
    %v38 = vmul.f32 %v36, 0.03125
    %v39 = vadd.f32 %v37, 1e-06
    %v40 = vadd.f32 %v38, 1e-06
    %v41 = vrsqrt.pop %v39
    %v42 = vrsqrt.pop %v40
    %v43 = vld [vmem:[%s1] sm:$0x1]
    %v44 = vmul.f32 %v26, %v41
    %v45 = vmul.f32 %v27, %v42
    %v47 = vlaneseq
    %v48 = vshrl.u32 %v47, 7
    %v49 = vsub.s32 0, %v48
    %v50 = vrot.slane %v43, %v49
    %v52 = vmul.f32 %v44, %v50
    %v53 = vmul.f32 %v45, %v50
    %54 = vst.msk [vmem:[#allocation5] sm:$0xff] %vm30, %v52
    %55 = vst.msk [vmem:[#allocation5 + $0x8] sm:$0xff] %vm30, %v53
    // Predicated region
    $region14: #{tpu_custom_call.1} parent=1 // pred_check
      _
    $region15: #{tpu_custom_call.1} parent=1 // pred_check_branch
      %57 = sbr.rel (0) target = $region17
    $region16: #{tpu_custom_call.1} parent=1 // pred_region
      %s59 = ssub.s32 256, 256
      %60 = vsyncadd [#allocation4], %s59
      %s61 = sshll.u32 [#allocation5], 4
      %s62 = int_to_ptr.vmem [resolvable:$true] %s61
      %67 = dma.vmem_to_hbm [thread:$0]  %s62, 256, %s2, [#allocation4], 128, 128, 8
    $region17: #{tpu_custom_call.1} parent=1 // pred_fallthru
      _
    // Predicated region
    $region18: #{tpu_custom_call.1} parent=1 // pred_check
      _
    $region19: #{tpu_custom_call.1} parent=1 // pred_check_branch
      %69 = sbr.rel (0) target = $region21
    $region20: #{tpu_custom_call.1} parent=1 // pred_region
      %70 = dma.done [#allocation4], 256
    $region21: #{tpu_custom_call.1} parent=1 // pred_fallthru
      _
    %71 = vsyncpa [#allocation3], 1
    %72 = vsyncpa [#allocation4], 1

</llo_original>
